<compile_context>
chip_gen: v6e
topology: v6e:2x2x1
jax: 0.10.0
libtpu: 0.0.40
codegen_flags: <defaults>
</compile_context>

<pallas_src>
import jax
import jax.numpy as jnp
from jax.experimental import pallas as pl
from jax.experimental.pallas import tpu as pltpu


def _conv_add_kernel(w_ref, b_ref, p_ref, other_ref, o_ref):
    # w_ref:     (Cout, Cin*K*K)      conv weights, channels-first slab
    # b_ref:     (Cout, 1)            conv bias
    # p_ref:     (1, Cin*K*K, Ho*Wo)  im2col patches for this batch element
    # other_ref: (1, Cout, Ho*Wo)     tensor added to the conv output
    # o_ref:     (1, Cout, Ho*Wo)
    acc = jnp.dot(w_ref[...], p_ref[0], preferred_element_type=jnp.float32)
    o_ref[0] = (acc + b_ref[...] + other_ref[0]).astype(o_ref.dtype)


def conv2d_add(x_nchw, other_nchw, weight_oihw, bias, *, padding=2):
    """Conv2d(stride=1, padding=padding) + bias + elementwise add, via Pallas."""
    N, Cin, H, W = x_nchw.shape
    Cout, Cin_w, K, K2 = weight_oihw.shape
    assert Cin == Cin_w and K == K2
    Ho = H + 2 * padding - K + 1
    Wo = W + 2 * padding - K + 1
    CK = Cin * K * K
    HW = Ho * Wo

    # Wrapper-side layout glue (plain XLA): spatial zero-pad + im2col.
    # patches[n, cin*K*K + kh*K + kw, ho*Wo + wo] = xp[n, cin, ho+kh, wo+kw]
    xp = jnp.pad(x_nchw, ((0, 0), (0, 0), (padding, padding), (padding, padding)))
    taps = [xp[:, :, kh:kh + Ho, kw:kw + Wo] for kh in range(K) for kw in range(K)]
    patches = jnp.stack(taps, axis=2).reshape(N, CK, HW)       # (N, Cin*K*K, Ho*Wo)

    w2 = weight_oihw.reshape(Cout, CK)                         # (Cout, Cin*K*K)
    b2 = bias.reshape(Cout, 1)                                 # (Cout, 1)
    other2 = other_nchw.reshape(N, Cout, HW)                   # channels-first already

    cost = pl.CostEstimate(
        flops=2 * N * Cout * CK * HW,
        transcendentals=0,
        bytes_accessed=4 * (N * CK * HW + Cout * CK + Cout + 2 * N * Cout * HW),
    )

    out = pl.pallas_call(
        _conv_add_kernel,
        out_shape=jax.ShapeDtypeStruct((N, Cout, HW), jnp.float32),
        grid=(N,),
        in_specs=[
            pl.BlockSpec((Cout, CK), lambda n: (0, 0)),        # weights: resident
            pl.BlockSpec((Cout, 1), lambda n: (0, 0)),         # bias: resident
            pl.BlockSpec((1, CK, HW), lambda n: (n, 0, 0)),    # im2col patches
            pl.BlockSpec((1, Cout, HW), lambda n: (n, 0, 0)),  # `other`
        ],
        out_specs=pl.BlockSpec((1, Cout, HW), lambda n: (n, 0, 0)),
        compiler_params=pltpu.CompilerParams(
            dimension_semantics=("parallel",)),
        cost_estimate=cost,
    )(w2, b2, patches, other2)

    return out.reshape(N, Cout, Ho, Wo)


if __name__ == "__main__":
    key = jax.random.PRNGKey(0)
    k_x, k_o, k_w, k_b = jax.random.split(key, 4)

    # Small shapes consistent with the module: Conv2d(48, 2, 3, stride=1, padding=2)
    N, Cin, H, W = 2, 48, 16, 16
    Cout, K, pad = 2, 3, 2
    Ho = H + 2 * pad - K + 1   # 18
    Wo = W + 2 * pad - K + 1   # 18

    x1 = jax.random.normal(k_x, (N, Cin, H, W), dtype=jnp.float32)
    # TODO(synk): the original script's `other` (1, 64, 32, 32) is not broadcast-
    # compatible with the conv output; use a conv-output-shaped `other` instead.
    other = jax.random.normal(k_o, (N, Cout, Ho, Wo), dtype=jnp.float32)

    # Deterministic parameter init (matches PyTorch Conv2d param shapes).
    fan_in = Cin * K * K
    bound = 1.0 / (fan_in ** 0.5)
    weight = jax.random.uniform(k_w, (Cout, Cin, K, K), jnp.float32, -bound, bound)
    bias = jax.random.uniform(k_b, (Cout,), jnp.float32, -bound, bound)

    out = conv2d_add(x1, other, weight, bias, padding=pad)
    out = jax.block_until_ready(out)

    # Cross-check against XLA's conv for correctness.
    ref = jax.lax.conv_general_dilated(
        x1, weight, window_strides=(1, 1), padding=[(pad, pad), (pad, pad)],
        dimension_numbers=("NCHW", "OIHW", "NCHW"))
    ref = ref + bias.reshape(1, Cout, 1, 1) + other
    assert out.shape == (N, Cout, Ho, Wo)
    assert jnp.allclose(out, ref, atol=1e-4, rtol=1e-4)

    print("KERNEL_OK")
</pallas_src>

<mosaic_0001>
module attributes {stable_mosaic.version = 11 : i64} {
  func.func @_conv_add_kernel(%arg0: i32, %arg1: memref<2x432xf32, #tpu.memory_space<vmem>>, %arg2: memref<2x1xf32, #tpu.memory_space<vmem>>, %arg3: memref<1x432x324xf32, #tpu.memory_space<vmem>>, %arg4: memref<1x2x324xf32, #tpu.memory_space<vmem>>, %arg5: memref<1x2x324xf32, #tpu.memory_space<vmem>>) attributes {dimension_semantics = [#tpu.dimension_semantics<parallel>], iteration_bounds = array<i64: 2>, scalar_prefetch = 0 : i64, scratch_operands = 0 : i64, tpu.core_type = #tpu.core_type<tc>, window_params = [{pipeline_mode = #tpu.pipeline_mode<synchronous>, transform_indices = @transform_0, window_bounds = array<i64: 2, 432>}, {pipeline_mode = #tpu.pipeline_mode<synchronous>, transform_indices = @transform_1, window_bounds = array<i64: 2, 1>}, {transform_indices = @transform_2, window_bounds = array<i64: 1, 432, 324>}, {transform_indices = @transform_3, window_bounds = array<i64: 1, 2, 324>}, {transform_indices = @transform_4, window_bounds = array<i64: 1, 2, 324>}]} {
    %c0 = arith.constant 0 : index
    %c0_0 = arith.constant 0 : index
    %0 = vector.load %arg1[%c0, %c0_0] : memref<2x432xf32, #tpu.memory_space<vmem>>, vector<2x432xf32>
    %c0_1 = arith.constant 0 : index
    %c0_2 = arith.constant 0 : index
    %c0_3 = arith.constant 0 : index
    %1 = vector.load %arg3[%c0_1, %c0_2, %c0_3] : memref<1x432x324xf32, #tpu.memory_space<vmem>>, vector<1x432x324xf32>
    %2 = vector.shape_cast %1 : vector<1x432x324xf32> to vector<432x324xf32>
    %cst = arith.constant dense<0.000000e+00> : vector<2x324xf32>
    %3 = tpu.matmul %0, %2, %cst {dimension_numbers = #tpu.dot_dimension_numbers<[1], [0], [0], [1], [0, 0, 1, 1], [], []>} : vector<2x432xf32>, vector<432x324xf32>, vector<2x324xf32> -> vector<2x324xf32>
    %c0_4 = arith.constant 0 : index
    %c0_5 = arith.constant 0 : index
    %4 = vector.load %arg2[%c0_4, %c0_5] : memref<2x1xf32, #tpu.memory_space<vmem>>, vector<2x1xf32>
    %5 = vector.broadcast %4 : vector<2x1xf32> to vector<2x324xf32>
    %6 = arith.addf %3, %5 : vector<2x324xf32>
    %c0_6 = arith.constant 0 : index
    %c0_7 = arith.constant 0 : index
    %c0_8 = arith.constant 0 : index
    %7 = vector.load %arg4[%c0_6, %c0_7, %c0_8] : memref<1x2x324xf32, #tpu.memory_space<vmem>>, vector<1x2x324xf32>
    %8 = vector.shape_cast %7 : vector<1x2x324xf32> to vector<2x324xf32>
    %9 = arith.addf %6, %8 : vector<2x324xf32>
    %c0_9 = arith.constant 0 : index
    %c0_10 = arith.constant 0 : index
    %c0_11 = arith.constant 0 : index
    %10 = vector.load %arg5[%c0_9, %c0_10, %c0_11] : memref<1x2x324xf32, #tpu.memory_space<vmem>>, vector<1x2x324xf32>
    %11 = vector.shape_cast %10 : vector<1x2x324xf32> to vector<2x324xf32>
    %12 = vector.shape_cast %9 : vector<2x324xf32> to vector<1x2x324xf32>
    tpu.vector_store %arg5[%c0_9, %c0_10, %c0_11], %12 {strides = array<i32>} : memref<1x2x324xf32, #tpu.memory_space<vmem>>, vector<1x2x324xf32>,
    return
  }
  func.func @transform_0(%arg0: i32) -> (i32, i32) {
    %c0_i32 = arith.constant 0 : i32
    %c0_i32_0 = arith.constant 0 : i32
    %c0_i32_1 = arith.constant 0 : i32
    return %c0_i32, %c0_i32_0 : i32, i32
  }
  func.func @transform_1(%arg0: i32) -> (i32, i32) {
    %c0_i32 = arith.constant 0 : i32
    %c0_i32_0 = arith.constant 0 : i32
    %c0_i32_1 = arith.constant 0 : i32
    return %c0_i32, %c0_i32_0 : i32, i32
  }
  func.func @transform_2(%arg0: i32) -> (i32, i32, i32) {
    %c0_i32 = arith.constant 0 : i32
    %c0_i32_0 = arith.constant 0 : i32
    %c0_i32_1 = arith.constant 0 : i32
    return %arg0, %c0_i32, %c0_i32_0 : i32, i32, i32
  }
  func.func @transform_3(%arg0: i32) -> (i32, i32, i32) {
    %c0_i32 = arith.constant 0 : i32
    %c0_i32_0 = arith.constant 0 : i32
    %c0_i32_1 = arith.constant 0 : i32
    return %arg0, %c0_i32, %c0_i32_0 : i32, i32, i32
  }
  func.func @transform_4(%arg0: i32) -> (i32, i32, i32) {
    %c0_i32 = arith.constant 0 : i32
    %c0_i32_0 = arith.constant 0 : i32
    %c0_i32_1 = arith.constant 0 : i32
    return %arg0, %c0_i32, %c0_i32_0 : i32, i32, i32
  }
}

</mosaic_0001>

<llo_original>
// kernel: tpu_custom_call.1
$region0: #{tpu_custom_call.1}
  #allocation0 [shape = 'u32[]', space=smem, size = 0x4, offset = 0x4, fixed_abs, tag = 'smem constant byte address 0x4 - core index']
  #allocation1 [shape = 'u32[144,128]{1,0:T(1,128)}', space=vmem, size = 0x12000, scoped, tag = 'internal scratch']
  %s0 = inlined_call_operand.hbm [shape: f32[2,432], index: 0, kind: input, shape index: {}]
  %s1 = inlined_call_operand.vmem [shape: f32[2,1], index: 1, kind: input, shape index: {}]
  %s2 = inlined_call_operand.hbm [shape: f32[2,432,324], index: 2, kind: input, shape index: {}]
  %s3 = inlined_call_operand.hbm [shape: f32[2,2,324], index: 3, kind: input, shape index: {}]
  %s4 = inlined_call_operand.hbm [shape: f32[2,2,324], index: 4, kind: output, shape index: {}]
  %s5 = sld [smem:[#allocation0]]
  $region61: #{tpu_custom_call.1} parent=0
    _
  %s7 = ssub.s32 1, %s5
  %s8 = scalar_select 0, %s7, %s5
  $region1: #{tpu_custom_call.1} parent=0
    #allocation2 [shape = 'u8[4096]{0}', space=vmem, size = 0x1000, scoped, tag = 'input window, operand 0, single buffered']
    #allocation3 [shape = 's32[2]{0}', space=sflag, size = 0x8, scoped, tag = 'scoped memory for tpu_custom_call.1']
    #allocation4 [shape = 's32[2]{0}', space=sflag, size = 0x8, scoped, tag = 'scoped memory for tpu_custom_call.1']
    #allocation5 [shape = 'u8[1327104]{0}', space=vmem, size = 0x144000, scoped, tag = 'input window, operand 2']
    #allocation6 [shape = 's32[2]{0}', space=sflag, size = 0x8, scoped, tag = 'scoped memory for tpu_custom_call.1']
    #allocation7 [shape = 'u8[6144]{0}', space=vmem, size = 0x1800, scoped, tag = 'input window, operand 3']
    #allocation8 [shape = 'u8[6144]{0}', space=vmem, size = 0x1800, scoped, tag = 'output window, operand 0']
    %9 = vsyncpa [#allocation3], 0
    %10 = vsyncpa [#allocation6], 0
    %s11 = scalar_lea.sflag [#allocation6], 1
    %12 = vsyncpa %s11, 0
    %13 = vsyncpa [#allocation4], 0
    %s14 = scalar_lea.sflag [#allocation4], 1
    %15 = vsyncpa %s14, 0
    loop: start=0, step=1, limit=4
    $region2: #{tpu_custom_call.1} parent=1 // loop_pre_header
      _
    $region3: #{tpu_custom_call.1} parent=1 // loop_header
      %s17 = sphi 0, %s21
      %p18 = scmp.ge.s32.totalorder %s17, 4
      %s25 = sphi 0, %s25
      %s27 = sphi 0, %s25
      %s28 = sphi 0, %s27
      %s42 = sphi 0, %s28
      %s46 = sphi 0, %s46
      %s48 = sphi 0, %s46
      %s49 = sphi 0, %s48
      %s63 = sphi 0, %s49
      %s69 = sphi 0, %s71
      %s72 = sphi 0, %s69
      %s73 = sphi 0, %s72
      %s89 = sphi 0, %s73
      %s95 = sphi 0, %s97
      %s98 = sphi 0, %s95
      %s99 = sphi 0, %s98
      %s115 = sphi 0, %s99
      %s121 = sphi 0, %s123
      %s124 = sphi 0, %s121
      %s125 = sphi 0, %s124
      %s141 = sphi 0, %s125
    $region4: #{tpu_custom_call.1} parent=1 // loop_header_branch
      %20 = sbr.rel (%p18) target = $region8
    $region5: #{tpu_custom_call.1} parent=1 // loop_body
      %s22 = ssub.s32 %s17, 1
      %s23 = ssub.s32 %s17, 2
      %s24 = sadd.s32 %s17, 1
      %s26 = sadd.s32 %s25, 1
      %p29 = scmp.eq.s32.totalorder %s17, 1
      %p30 = scmp.ne.s32.totalorder %s25, %s27
      %p31 = scmp.eq.s32.totalorder %s17, 0
      %p32 = por %p30, %p31
      %p33 = scmp.ne.s32.totalorder %s25, %s27
      %p34 = scmp.eq.s32.totalorder %s22, 1
      %p35 = por %p33, %p34
      %p36 = scmp.ne.s32.totalorder %s27, %s28
      %p37 = scmp.eq.s32.totalorder %s22, 0
      %p38 = por %p36, %p37
      %p39 = scmp.ne.s32.totalorder %s27, %s28
      %p40 = scmp.eq.s32.totalorder %s23, 1
      %p41 = por %p39, %p40
      %p43 = scmp.ne.s32.totalorder %s28, %s42
      %p44 = scmp.eq.s32.totalorder %s23, 0
      %p45 = por %p43, %p44
      %s47 = sadd.s32 %s46, 1
      %p50 = scmp.eq.s32.totalorder %s17, 1
      %p51 = scmp.ne.s32.totalorder %s46, %s48
      %p52 = scmp.eq.s32.totalorder %s17, 0
      %p53 = por %p51, %p52
      %p54 = scmp.ne.s32.totalorder %s46, %s48
      %p55 = scmp.eq.s32.totalorder %s22, 1
      %p56 = por %p54, %p55
      %p57 = scmp.ne.s32.totalorder %s48, %s49
      %p58 = scmp.eq.s32.totalorder %s22, 0
      %p59 = por %p57, %p58
      %p60 = scmp.ne.s32.totalorder %s48, %s49
      %p61 = scmp.eq.s32.totalorder %s23, 1
      %p62 = por %p60, %p61
      %p64 = scmp.ne.s32.totalorder %s49, %s63
      %p65 = scmp.eq.s32.totalorder %s23, 0
      %p66 = por %p64, %p65
      %s67 = ssub.s32 %s17, %s24
      %p68 = scmp.eq.s32.totalorder %s67, 0
      %s70 = sadd.s32 %s69, 1
      %s71 = scalar_select %p68, %s69, %s70
      %p74 = pneg %p68
      %p75 = scmp.eq.s32.totalorder %s17, 1
      %p76 = por %p74, %p75
      %p77 = scmp.ne.s32.totalorder %s69, %s72
      %p78 = scmp.eq.s32.totalorder %s17, 0
      %p79 = por %p77, %p78
      %p80 = scmp.ne.s32.totalorder %s69, %s72
      %p81 = scmp.eq.s32.totalorder %s22, 1
      %p82 = por %p80, %p81
      %p83 = scmp.ne.s32.totalorder %s72, %s73
      %p84 = scmp.eq.s32.totalorder %s22, 0
      %p85 = por %p83, %p84
      %p86 = scmp.ne.s32.totalorder %s72, %s73
      %p87 = scmp.eq.s32.totalorder %s23, 1
      %p88 = por %p86, %p87
      %p90 = scmp.ne.s32.totalorder %s73, %s89
      %p91 = scmp.eq.s32.totalorder %s23, 0
      %p92 = por %p90, %p91
      %s93 = ssub.s32 %s17, %s24
      %p94 = scmp.eq.s32.totalorder %s93, 0
      %s96 = sadd.s32 %s95, 1
      %s97 = scalar_select %p94, %s95, %s96
      %p100 = pneg %p94
      %p101 = scmp.eq.s32.totalorder %s17, 1
      %p102 = por %p100, %p101
      %p103 = scmp.ne.s32.totalorder %s95, %s98
      %p104 = scmp.eq.s32.totalorder %s17, 0
      %p105 = por %p103, %p104
      %p106 = scmp.ne.s32.totalorder %s95, %s98
      %p107 = scmp.eq.s32.totalorder %s22, 1
      %p108 = por %p106, %p107
      %p109 = scmp.ne.s32.totalorder %s98, %s99
      %p110 = scmp.eq.s32.totalorder %s22, 0
      %p111 = por %p109, %p110
      %p112 = scmp.ne.s32.totalorder %s98, %s99
      %p113 = scmp.eq.s32.totalorder %s23, 1
      %p114 = por %p112, %p113
      %p116 = scmp.ne.s32.totalorder %s99, %s115
      %p117 = scmp.eq.s32.totalorder %s23, 0
      %p118 = por %p116, %p117
      %s119 = ssub.s32 %s17, %s24
      %p120 = scmp.eq.s32.totalorder %s119, 0
      %s122 = sadd.s32 %s121, 1
      %s123 = scalar_select %p120, %s121, %s122
      %p126 = pneg %p120
      %p127 = scmp.eq.s32.totalorder %s17, 1
      %p128 = por %p126, %p127
      %p129 = scmp.ne.s32.totalorder %s121, %s124
      %p130 = scmp.eq.s32.totalorder %s17, 0
      %p131 = por %p129, %p130
      %p132 = scmp.ne.s32.totalorder %s121, %s124
      %p133 = scmp.eq.s32.totalorder %s22, 1
      %p134 = por %p132, %p133
      %p135 = scmp.ne.s32.totalorder %s124, %s125
      %p136 = scmp.eq.s32.totalorder %s22, 0
      %p137 = por %p135, %p136
      %p138 = scmp.ne.s32.totalorder %s124, %s125
      %p139 = scmp.eq.s32.totalorder %s23, 1
      %p140 = por %p138, %p139
      %p142 = scmp.ne.s32.totalorder %s125, %s141
      %p143 = scmp.eq.s32.totalorder %s23, 0
      %p144 = por %p142, %p143
      %p145 = scmp.le.s32.totalorder 1, %s17
      %p146 = scmp.lt.s32.totalorder %s17, 3
      %p147 = pnand %p145, %p146
      %p148 = pneg %p147
      // Predicated region
      $region9: #{tpu_custom_call.1} parent=5 // pred_check
        _
      $region10: #{tpu_custom_call.1} parent=5 // pred_check_branch
        %150 = sbr.rel (%p147) target = $region12
      $region11: #{tpu_custom_call.1} parent=5 // pred_region
        %s151 = ssub.s32 %s17, 1
        // Predicated region
        $region13: #{tpu_custom_call.1} parent=11 // pred_check
          %p152 = pneg %p38
        $region14: #{tpu_custom_call.1} parent=11 // pred_check_branch
          %154 = sbr.rel (%p152) target = $region16
        $region15: #{tpu_custom_call.1} parent=11 // pred_region
          %s156 = ssub.s32 128, 128
          %157 = vsyncadd [#allocation3], %s156
          %s159 = sshll.u32 [#allocation2], 4
          %s160 = int_to_ptr.vmem [resolvable:$true] %s159
          %162 = dma.hbm_to_vmem [thread:$0]  %s0, 128, %s160, [#allocation3]
        $region16: #{tpu_custom_call.1} parent=11 // pred_fallthru
          _
        // Predicated region
        $region17: #{tpu_custom_call.1} parent=11 // pred_check
          %p163 = pneg %p59
        $region18: #{tpu_custom_call.1} parent=11 // pred_check_branch
          %165 = sbr.rel (%p163) target = $region20
        $region19: #{tpu_custom_call.1} parent=11 // pred_region
          _
        $region20: #{tpu_custom_call.1} parent=11 // pred_fallthru
          _
      $region12: #{tpu_custom_call.1} parent=5 // pred_fallthru
        _
      %p166 = scmp.lt.s32.totalorder %s17, 2
      // Predicated region
      $region21: #{tpu_custom_call.1} parent=5 // pred_check
        %p167 = pneg %p166
      $region22: #{tpu_custom_call.1} parent=5 // pred_check_branch
        %169 = sbr.rel (%p167) target = $region24
      $region23: #{tpu_custom_call.1} parent=5 // pred_region
        // Predicated region
        $region25: #{tpu_custom_call.1} parent=23 // pred_check
          %p170 = pneg %p79
        $region26: #{tpu_custom_call.1} parent=23 // pred_check_branch
          %172 = sbr.rel (%p170) target = $region28
        $region27: #{tpu_custom_call.1} parent=23 // pred_region
          %s173 = sand.u32 %s17, 1
          %s174 = scalar_lea.sflag [#allocation6], %s173
          %s175 = sand.u32 %s69, 1
          %s176 = smul.addr %s175, 1296
          %s177 = scalar_lea.vmem [#allocation5], %s176
          %s179 = ssub.s32 20736, 20736
          %180 = vsyncadd %s174, %s179
          %s181 = smul.addr %s17, 162
          %s182 = smul.addr %s181, 128
          %s183 = scalar_lea.hbm %s2, %s182
          %s184 = sshll.u32 %s177, 4
          %s185 = int_to_ptr.vmem [resolvable:$true] %s184
          %190 = dma.hbm_to_vmem [thread:$0]  %s183, 20736, %s185, %s174, 384, 384, 24
        $region28: #{tpu_custom_call.1} parent=23 // pred_fallthru
          _
        // Predicated region
        $region29: #{tpu_custom_call.1} parent=23 // pred_check
          %p191 = pneg %p105
        $region30: #{tpu_custom_call.1} parent=23 // pred_check_branch
          %193 = sbr.rel (%p191) target = $region32
        $region31: #{tpu_custom_call.1} parent=23 // pred_region
          %s194 = sand.u32 %s17, 1
          %s195 = scalar_lea.sflag [#allocation6], %s194
          %s196 = sand.u32 %s95, 1
          %s197 = smul.addr %s196, 6
          %s198 = scalar_lea.vmem [#allocation7], %s197
          %s200 = ssub.s32 96, 96
          %201 = vsyncadd %s195, %s200
          %s202 = smul.addr %s17, 3
          %s203 = smul.addr %s202, 32
          %s204 = scalar_lea.hbm %s3, %s203
          %s206 = sshll.u32 %s198, 4
          %s207 = int_to_ptr.vmem [resolvable:$true] %s206
          %209 = dma.hbm_to_vmem [thread:$0]  %s204, 96, %s207, %s195
        $region32: #{tpu_custom_call.1} parent=23 // pred_fallthru
          _
      $region24: #{tpu_custom_call.1} parent=5 // pred_fallthru
        _
      %p210 = scmp.le.s32.totalorder 1, %s17
      %p211 = scmp.lt.s32.totalorder %s17, 3
      %p212 = pnand %p210, %p211
      %p213 = pneg %p212
      // Predicated region
      $region33: #{tpu_custom_call.1} parent=5 // pred_check
        _
      $region34: #{tpu_custom_call.1} parent=5 // pred_check_branch
        %215 = sbr.rel (%p212) target = $region36
      $region35: #{tpu_custom_call.1} parent=5 // pred_region
        %s216 = ssub.s32 %s17, 1
        // Predicated region
        $region37: #{tpu_custom_call.1} parent=35 // pred_check
          %p217 = pneg %p38
        $region38: #{tpu_custom_call.1} parent=35 // pred_check_branch
          %219 = sbr.rel (%p217) target = $region40
        $region39: #{tpu_custom_call.1} parent=35 // pred_region
          %220 = dma.done [#allocation3], 128
        $region40: #{tpu_custom_call.1} parent=35 // pred_fallthru
          _
        %s221 = sand.u32 %s22, 1
        %s222 = scalar_lea.sflag [#allocation6], %s221
        %s223 = sand.u32 %s72, 1
        %s224 = smul.addr %s223, 1296
        %s225 = scalar_lea.vmem [#allocation5], %s224
        // Predicated region
        $region41: #{tpu_custom_call.1} parent=35 // pred_check
          %p226 = pneg %p85
        $region42: #{tpu_custom_call.1} parent=35 // pred_check_branch
          %228 = sbr.rel (%p226) target = $region44
        $region43: #{tpu_custom_call.1} parent=35 // pred_region
          %229 = dma.done %s222, 20736
        $region44: #{tpu_custom_call.1} parent=35 // pred_fallthru
          _
        %s230 = sand.u32 %s22, 1
        %s231 = scalar_lea.sflag [#allocation6], %s230
        %s232 = sand.u32 %s98, 1
        %s233 = smul.addr %s232, 6
        %s234 = scalar_lea.vmem [#allocation7], %s233
        // Predicated region
        $region45: #{tpu_custom_call.1} parent=35 // pred_check
          %p235 = pneg %p111
        $region46: #{tpu_custom_call.1} parent=35 // pred_check_branch
          %237 = sbr.rel (%p235) target = $region48
        $region47: #{tpu_custom_call.1} parent=35 // pred_region
          %238 = dma.done %s231, 96
        $region48: #{tpu_custom_call.1} parent=35 // pred_fallthru
          _
        %p239 = pneg %p38
        %p240 = pneg %p35
        %p241 = pneg %p59
        %p242 = pneg %p56
        %s243 = sand.u32 %s22, 1
        %s244 = scalar_lea.sflag [#allocation6], %s243
        %s245 = sand.u32 %s72, 1
        %s246 = smul.addr %s245, 1296
        %s247 = scalar_lea.vmem [#allocation5], %s246
        %p248 = pneg %p85
        %p249 = pneg %p82
        %s250 = sand.u32 %s22, 1
        %s251 = scalar_lea.sflag [#allocation6], %s250
        %s252 = sand.u32 %s98, 1
        %s253 = smul.addr %s252, 6
        %s254 = scalar_lea.vmem [#allocation7], %s253
        %p255 = pneg %p111
        %p256 = pneg %p108
        %p257 = pneg %p137
        %p258 = pneg %p134
        %s259 = sand.u32 %s124, 1
        %s260 = scalar_lea.sflag [#allocation4], %s259
        %s261 = sand.u32 %s124, 1
        %s262 = smul.addr %s261, 6
        %s263 = scalar_lea.vmem [#allocation8], %s262
        %v264 = vld [vmem:[#allocation2] sm:$0xff]
        %v265 = vld [vmem:[%s225] sm:$0xff]
        %v266 = vld [vmem:[%s225 + $0x8] sm:$0xff]
        %v267 = vld [vmem:[%s225 + $0x10] sm:$0xff]
        %v268 = vld [vmem:[%s225 + $0x18] sm:$0xff]
        %v269 = vld [vmem:[%s225 + $0x20] sm:$0xff]
        %v270 = vld [vmem:[%s225 + $0x28] sm:$0xff]
        %v271 = vld [vmem:[%s225 + $0x30] sm:$0xff]
        %v272 = vld [vmem:[%s225 + $0x38] sm:$0xff]
        %v273 = vld [vmem:[%s225 + $0x40] sm:$0xff]
        %v274 = vld [vmem:[%s225 + $0x48] sm:$0xff]
        %v275 = vld [vmem:[%s225 + $0x50] sm:$0xff]
        %v276 = vld [vmem:[%s225 + $0x58] sm:$0xff]
        %v277 = vld [vmem:[%s225 + $0x60] sm:$0xff]
        %v278 = vld [vmem:[%s225 + $0x68] sm:$0xff]
        %v279 = vld [vmem:[%s225 + $0x70] sm:$0xff]
        %v280 = vld [vmem:[%s225 + $0x78] sm:$0xff]
        %v281 = vld [vmem:[%s225 + $0x80] sm:$0xff]
        %v282 = vld [vmem:[%s225 + $0x88] sm:$0xff]
        %v283 = vld [vmem:[%s225 + $0x90] sm:$0xff]
        %v284 = vld [vmem:[%s225 + $0x98] sm:$0xff]
        %v285 = vld [vmem:[%s225 + $0xa0] sm:$0xff]
        %v286 = vld [vmem:[%s225 + $0xa8] sm:$0xff]
        %v287 = vld [vmem:[%s225 + $0xb0] sm:$0xff]
        %v288 = vld [vmem:[%s225 + $0xb8] sm:$0xff]
        %v289 = vld [vmem:[%s225 + $0xc0] sm:$0xff]
        %v290 = vld [vmem:[%s225 + $0xc8] sm:$0xff]
        %v291 = vld [vmem:[%s225 + $0xd0] sm:$0xff]
        %v292 = vld [vmem:[%s225 + $0xd8] sm:$0xff]
        %v293 = vld [vmem:[%s225 + $0xe0] sm:$0xff]
        %v294 = vld [vmem:[%s225 + $0xe8] sm:$0xff]
        %v295 = vld [vmem:[%s225 + $0xf0] sm:$0xff]
        %v296 = vld [vmem:[%s225 + $0xf8] sm:$0xff]
        %v297 = vld [vmem:[%s225 + $0x100] sm:$0xff]
        %v298 = vld [vmem:[%s225 + $0x108] sm:$0xff]
        %v299 = vld [vmem:[%s225 + $0x110] sm:$0xff]
        %v300 = vld [vmem:[%s225 + $0x118] sm:$0xff]
        %v301 = vld [vmem:[%s225 + $0x120] sm:$0xff]
        %v302 = vld [vmem:[%s225 + $0x128] sm:$0xff]
        %v303 = vld [vmem:[%s225 + $0x130] sm:$0xff]
        %v304 = vld [vmem:[%s225 + $0x138] sm:$0xff]
        %v305 = vld [vmem:[%s225 + $0x140] sm:$0xff]
        %v306 = vld [vmem:[%s225 + $0x148] sm:$0xff]
        %v307 = vld [vmem:[%s225 + $0x150] sm:$0xff]
        %v308 = vld [vmem:[%s225 + $0x158] sm:$0xff]
        %v309 = vld [vmem:[%s225 + $0x160] sm:$0xff]
        %v310 = vld [vmem:[%s225 + $0x168] sm:$0xff]
        %v311 = vld [vmem:[%s225 + $0x170] sm:$0xff]
        %v312 = vld [vmem:[%s225 + $0x178] sm:$0xff]
        %v313 = vld [vmem:[%s225 + $0x180] sm:$0xff]
        %v314 = vld [vmem:[%s225 + $0x188] sm:$0xff]
        %v315 = vld [vmem:[%s225 + $0x190] sm:$0xff]
        %v316 = vld [vmem:[%s225 + $0x198] sm:$0xff]
        %v317 = vld [vmem:[%s225 + $0x1a0] sm:$0xff]
        %v318 = vld [vmem:[%s225 + $0x1a8] sm:$0xff]
        %v319 = vld [vmem:[%s225 + $0x1b0] sm:$0xff]
        %v320 = vld [vmem:[%s225 + $0x1b8] sm:$0xff]
        %v321 = vld [vmem:[%s225 + $0x1c0] sm:$0xff]
        %v322 = vld [vmem:[%s225 + $0x1c8] sm:$0xff]
        %v323 = vld [vmem:[%s225 + $0x1d0] sm:$0xff]
        %v324 = vld [vmem:[%s225 + $0x1d8] sm:$0xff]
        %v325 = vld [vmem:[%s225 + $0x1e0] sm:$0xff]
        %v326 = vld [vmem:[%s225 + $0x1e8] sm:$0xff]
        %v327 = vld [vmem:[%s225 + $0x1f0] sm:$0xff]
        %v328 = vld [vmem:[%s225 + $0x1f8] sm:$0xff]
        %v329 = vld [vmem:[%s225 + $0x200] sm:$0xff]
        %v330 = vld [vmem:[%s225 + $0x208] sm:$0xff]
        %v331 = vld [vmem:[%s225 + $0x210] sm:$0xff]
        %v332 = vld [vmem:[%s225 + $0x218] sm:$0xff]
        %v333 = vld [vmem:[%s225 + $0x220] sm:$0xff]
        %v334 = vld [vmem:[%s225 + $0x228] sm:$0xff]
        %v335 = vld [vmem:[%s225 + $0x230] sm:$0xff]
        %v336 = vld [vmem:[%s225 + $0x238] sm:$0xff]
        %v337 = vld [vmem:[%s225 + $0x240] sm:$0xff]
        %v338 = vld [vmem:[%s225 + $0x248] sm:$0xff]
        %v339 = vld [vmem:[%s225 + $0x250] sm:$0xff]
        %v340 = vld [vmem:[%s225 + $0x258] sm:$0xff]
        %v341 = vld [vmem:[%s225 + $0x260] sm:$0xff]
        %v342 = vld [vmem:[%s225 + $0x268] sm:$0xff]
        %v343 = vld [vmem:[%s225 + $0x270] sm:$0xff]
        %v344 = vld [vmem:[%s225 + $0x278] sm:$0xff]
        %v345 = vld [vmem:[%s225 + $0x280] sm:$0xff]
        %v346 = vld [vmem:[%s225 + $0x288] sm:$0xff]
        %v347 = vld [vmem:[%s225 + $0x290] sm:$0xff]
        %v348 = vld [vmem:[%s225 + $0x298] sm:$0xff]
        %v349 = vld [vmem:[%s225 + $0x2a0] sm:$0xff]
        %v350 = vld [vmem:[%s225 + $0x2a8] sm:$0xff]
        %v351 = vld [vmem:[%s225 + $0x2b0] sm:$0xff]
        %v352 = vld [vmem:[%s225 + $0x2b8] sm:$0xff]
        %v353 = vld [vmem:[%s225 + $0x2c0] sm:$0xff]
        %v354 = vld [vmem:[%s225 + $0x2c8] sm:$0xff]
        %v355 = vld [vmem:[%s225 + $0x2d0] sm:$0xff]
        %v356 = vld [vmem:[%s225 + $0x2d8] sm:$0xff]
        %v357 = vld [vmem:[%s225 + $0x2e0] sm:$0xff]
        %v358 = vld [vmem:[%s225 + $0x2e8] sm:$0xff]
        %v359 = vld [vmem:[%s225 + $0x2f0] sm:$0xff]
        %v360 = vld [vmem:[%s225 + $0x2f8] sm:$0xff]
        %v361 = vld [vmem:[%s225 + $0x300] sm:$0xff]
        %v362 = vld [vmem:[%s225 + $0x308] sm:$0xff]
        %v363 = vld [vmem:[%s225 + $0x310] sm:$0xff]
        %v364 = vld [vmem:[%s225 + $0x318] sm:$0xff]
        %v365 = vld [vmem:[%s225 + $0x320] sm:$0xff]
        %v366 = vld [vmem:[%s225 + $0x328] sm:$0xff]
        %v367 = vld [vmem:[%s225 + $0x330] sm:$0xff]
        %v368 = vld [vmem:[%s225 + $0x338] sm:$0xff]
        %v369 = vld [vmem:[%s225 + $0x340] sm:$0xff]
        %v370 = vld [vmem:[%s225 + $0x348] sm:$0xff]
        %v371 = vld [vmem:[%s225 + $0x350] sm:$0xff]
        %v372 = vld [vmem:[%s225 + $0x358] sm:$0xff]
        %v373 = vld [vmem:[%s225 + $0x360] sm:$0xff]
        %v374 = vld [vmem:[%s225 + $0x368] sm:$0xff]
        %v375 = vld [vmem:[%s225 + $0x370] sm:$0xff]
        %v376 = vld [vmem:[%s225 + $0x378] sm:$0xff]
        %v377 = vld [vmem:[%s225 + $0x380] sm:$0xff]
        %v378 = vld [vmem:[%s225 + $0x388] sm:$0xff]
        %v379 = vld [vmem:[%s225 + $0x390] sm:$0xff]
        %v380 = vld [vmem:[%s225 + $0x398] sm:$0xff]
        %v381 = vld [vmem:[%s225 + $0x3a0] sm:$0xff]
        %v382 = vld [vmem:[%s225 + $0x3a8] sm:$0xff]
        %v383 = vld [vmem:[%s225 + $0x3b0] sm:$0xff]
        %v384 = vld [vmem:[%s225 + $0x3b8] sm:$0xff]
        %v385 = vld [vmem:[%s225 + $0x3c0] sm:$0xff]
        %v386 = vld [vmem:[%s225 + $0x3c8] sm:$0xff]
        %v387 = vld [vmem:[%s225 + $0x3d0] sm:$0xff]
        %v388 = vld [vmem:[%s225 + $0x3d8] sm:$0xff]
        %v389 = vld [vmem:[%s225 + $0x3e0] sm:$0xff]
        %v390 = vld [vmem:[%s225 + $0x3e8] sm:$0xff]
        %v391 = vld [vmem:[%s225 + $0x3f0] sm:$0xff]
        %v392 = vld [vmem:[%s225 + $0x3f8] sm:$0xff]
        %v393 = vld [vmem:[%s225 + $0x400] sm:$0xff]
        %v394 = vld [vmem:[%s225 + $0x408] sm:$0xff]
        %v395 = vld [vmem:[%s225 + $0x410] sm:$0xff]
        %v396 = vld [vmem:[%s225 + $0x418] sm:$0xff]
        %v397 = vld [vmem:[%s225 + $0x420] sm:$0xff]
        %v398 = vld [vmem:[%s225 + $0x428] sm:$0xff]
        %v399 = vld [vmem:[%s225 + $0x430] sm:$0xff]
        %v400 = vld [vmem:[%s225 + $0x438] sm:$0xff]
        %v401 = vld [vmem:[%s225 + $0x440] sm:$0xff]
        %v402 = vld [vmem:[%s225 + $0x448] sm:$0xff]
        %v403 = vld [vmem:[%s225 + $0x450] sm:$0xff]
        %v404 = vld [vmem:[%s225 + $0x458] sm:$0xff]
        %v405 = vld [vmem:[%s225 + $0x460] sm:$0xff]
        %v406 = vld [vmem:[%s225 + $0x468] sm:$0xff]
        %v407 = vld [vmem:[%s225 + $0x470] sm:$0xff]
        %v408 = vld [vmem:[%s225 + $0x478] sm:$0xff]
        %v409 = vld [vmem:[%s225 + $0x480] sm:$0xff]
        %v410 = vld [vmem:[%s225 + $0x488] sm:$0xff]
        %v411 = vld [vmem:[%s225 + $0x490] sm:$0xff]
        %v412 = vld [vmem:[%s225 + $0x498] sm:$0xff]
        %v413 = vld [vmem:[%s225 + $0x4a0] sm:$0xff]
        %v414 = vld [vmem:[%s225 + $0x4a8] sm:$0xff]
        %v415 = vld [vmem:[%s225 + $0x4b0] sm:$0xff]
        %v416 = vld [vmem:[%s225 + $0x4b8] sm:$0xff]
        %v417 = vld [vmem:[%s225 + $0x4c0] sm:$0xff]
        %v418 = vld [vmem:[%s225 + $0x4c8] sm:$0xff]
        %v419 = vld [vmem:[%s225 + $0x4d0] sm:$0xff]
        %v420 = vld [vmem:[%s225 + $0x4d8] sm:$0xff]
        %v421 = vld [vmem:[%s225 + $0x4e0] sm:$0xff]
        %v422 = vld [vmem:[%s225 + $0x4e8] sm:$0xff]
        %v423 = vld [vmem:[%s225 + $0x4f0] sm:$0xff]
        %v424 = vld [vmem:[%s225 + $0x4f8] sm:$0xff]
        %v425 = vld [vmem:[%s225 + $0x500] sm:$0xff]
        %v426 = vld [vmem:[%s225 + $0x508] sm:$0xff]
        %v427 = vld [vmem:[%s1] sm:$0x3]
        %429 = vset.pattern.permute.xlu0 0
        %430 = vperm.xlu0 %429, %v427
        %v431 = vpop.permute.xlu0 %430
        %v434 = vcombine.high %v264, %v264
        %v436 = vunpack.c.l.s4 1983009808
        %v437 = vunpack.c.0.s8 %v436
        %v438 = vlaneseq
        %v439 = vshrl.u32 %v438, 7
        %v440 = vsub.s32 %v437, %v439
        %v441 = vrot.slane %v264, %v440
        %v443 = vunpack.c.l.s4 1983009808
        %v444 = vunpack.c.0.s8 %v443
        %v445 = vlaneseq
        %v446 = vshrl.u32 %v445, 7
        %v447 = vsub.s32 %v444, %v446
        %v448 = vrot.slane %v434, %v447
        %v449 = vcombine.high %v441, %v441
        %v450 = vcombine.high %v448, %v448
        %vm454 = vcmask 392192
        %v455 = vsel %vm454, %v450, 0
        %457 = vmatprep.subr.mxu0 %v311
        %458 = vmatpush1.msra.mxu0 %v310
        %459 = vmatprep.subr.mxu0 %v308
        %460 = vmatpush1.msra.mxu0 %v307
        %461 = vmatprep.subr.mxu0 %v305
        %462 = vmatpush1.msra.mxu0 %v304
        %463 = vmatprep.subr.mxu0 %v302
        %464 = vmatpush1.msra.mxu0 %v301
        %465 = vmatprep.subr.mxu0 %v299
        %466 = vmatpush1.msra.mxu0 %v298
        %467 = vmatprep.subr.mxu0 %v296
        %468 = vmatpush1.msra.mxu0 %v295
        %469 = vmatprep.subr.mxu0 %v293
        %470 = vmatpush1.msra.mxu0 %v292
        %471 = vmatprep.subr.mxu0 %v290
        %472 = vmatpush1.msra.mxu0 %v289
        %473 = vmatprep.subr.mxu0 %v287
        %474 = vmatpush1.msra.mxu0 %v286
        %475 = vmatprep.subr.mxu0 %v284
        %476 = vmatpush1.msra.mxu0 %v283
        %477 = vmatprep.subr.mxu0 %v281
        %478 = vmatpush1.msra.mxu0 %v280
        %479 = vmatprep.subr.mxu0 %v278
        %480 = vmatpush1.msra.mxu0 %v277
        %481 = vmatprep.subr.mxu0 %v275
        %482 = vmatpush1.msra.mxu0 %v274
        %483 = vmatprep.subr.mxu0 %v272
        %484 = vmatpush1.msra.mxu0 %v271
        %485 = vmatprep.subr.mxu0 %v269
        %486 = vmatpush1.msra.mxu0 %v268
        %487 = vmatprep.subr.mxu0 %v266
        %488 = vmatpush1.msra.mxu0 %v265
        %489 = vmatprep.subr.mxu0 %v359
        %490 = vmatpush2.msra.mxu0 %v358
        %491 = vmatprep.subr.mxu0 %v356
        %492 = vmatpush2.msra.mxu0 %v355
        %493 = vmatprep.subr.mxu0 %v353
        %494 = vmatpush2.msra.mxu0 %v352
        %495 = vmatprep.subr.mxu0 %v350
        %496 = vmatpush2.msra.mxu0 %v349
        %497 = vmatprep.subr.mxu0 %v347
        %498 = vmatpush2.msra.mxu0 %v346
        %499 = vmatprep.subr.mxu0 %v344
        %500 = vmatpush2.msra.mxu0 %v343
        %501 = vmatprep.subr.mxu0 %v341
        %502 = vmatpush2.msra.mxu0 %v340
        %503 = vmatprep.subr.mxu0 %v338
        %504 = vmatpush2.msra.mxu0 %v337
        %505 = vmatprep.subr.mxu0 %v335
        %506 = vmatpush2.msra.mxu0 %v334
        %507 = vmatprep.subr.mxu0 %v332
        %508 = vmatpush2.msra.mxu0 %v331
        %509 = vmatprep.subr.mxu0 %v329
        %510 = vmatpush2.msra.mxu0 %v328
        %511 = vmatprep.subr.mxu0 %v326
        %512 = vmatpush2.msra.mxu0 %v325
        %513 = vmatprep.subr.mxu0 %v323
        %514 = vmatpush2.msra.mxu0 %v322
        %515 = vmatprep.subr.mxu0 %v320
        %516 = vmatpush2.msra.mxu0 %v319
        %517 = vmatprep.subr.mxu0 %v317
        %518 = vmatpush2.msra.mxu0 %v316
        %519 = vmatprep.subr.mxu0 %v314
        %520 = vmatpush2.msra.mxu0 %v313
        %521 = vmatprep.mubr.f32.mxu0 %v449
        %522 = vmatmul.mubr.f32.gmra.mxu0 %v441
        %v523 = vpop.f32.mrf.mxu0
        %v524 = vadd.f32 %v431, %v523
        %v525 = vpop.f32.mrf.mxu0
        %v526 = vadd.f32 %v431, %v525
        %527 = vdwg.mxu0
        %528 = vmatprep.subr.mxu0 %v407
        %529 = vmatpush1.msra.mxu0 %v406
        %530 = vmatprep.subr.mxu0 %v404
        %531 = vmatpush1.msra.mxu0 %v403
        %532 = vmatprep.subr.mxu0 %v401
        %533 = vmatpush1.msra.mxu0 %v400
        %534 = vmatprep.subr.mxu0 %v398
        %535 = vmatpush1.msra.mxu0 %v397
        %536 = vmatprep.subr.mxu0 %v395
        %537 = vmatpush1.msra.mxu0 %v394
        %538 = vmatprep.subr.mxu0 %v392
        %539 = vmatpush1.msra.mxu0 %v391
        %540 = vmatprep.subr.mxu0 %v389
        %541 = vmatpush1.msra.mxu0 %v388
        %542 = vmatprep.subr.mxu0 %v386
        %543 = vmatpush1.msra.mxu0 %v385
        %544 = vmatprep.subr.mxu0 %v383
        %545 = vmatpush1.msra.mxu0 %v382
        %546 = vmatprep.subr.mxu0 %v380
        %547 = vmatpush1.msra.mxu0 %v379
        %548 = vmatprep.subr.mxu0 %v377
        %549 = vmatpush1.msra.mxu0 %v376
        %550 = vmatprep.subr.mxu0 %v374
        %551 = vmatpush1.msra.mxu0 %v373
        %552 = vmatprep.subr.mxu0 %v371
        %553 = vmatpush1.msra.mxu0 %v370
        %554 = vmatprep.subr.mxu0 %v368
        %555 = vmatpush1.msra.mxu0 %v367
        %556 = vmatprep.subr.mxu0 %v365
        %557 = vmatpush1.msra.mxu0 %v364
        %558 = vmatprep.subr.mxu0 %v362
        %559 = vmatpush1.msra.mxu0 %v361
        %560 = vmatprep.subr.mxu0 0.0
        %561 = vmatpush2.msra.mxu0 0.0
        %562 = vmatprep.subr.mxu0 0.0
        %563 = vmatpush2.msra.mxu0 0.0
        %564 = vmatprep.subr.mxu0 0.0
        %565 = vmatpush2.msra.mxu0 0.0
        %566 = vmatprep.subr.mxu0 0.0
        %567 = vmatpush2.msra.mxu0 0.0
        %568 = vmatprep.subr.mxu0 0.0
        %569 = vmatpush2.msra.mxu0 0.0
        %570 = vmatprep.subr.mxu0 0.0
        %571 = vmatpush2.msra.mxu0 0.0
        %572 = vmatprep.subr.mxu0 0.0
        %573 = vmatpush2.msra.mxu0 0.0
        %574 = vmatprep.subr.mxu0 0.0
        %575 = vmatpush2.msra.mxu0 0.0
        %576 = vmatprep.subr.mxu0 0.0
        %577 = vmatpush2.msra.mxu0 0.0
        %578 = vmatprep.subr.mxu0 0.0
        %579 = vmatpush2.msra.mxu0 0.0
        %580 = vmatprep.subr.mxu0 %v425
        %581 = vmatpush2.msra.mxu0 %v424
        %582 = vmatprep.subr.mxu0 %v422
        %583 = vmatpush2.msra.mxu0 %v421
        %584 = vmatprep.subr.mxu0 %v419
        %585 = vmatpush2.msra.mxu0 %v418
        %586 = vmatprep.subr.mxu0 %v416
        %587 = vmatpush2.msra.mxu0 %v415
        %588 = vmatprep.subr.mxu0 %v413
        %589 = vmatpush2.msra.mxu0 %v412
        %590 = vmatprep.subr.mxu0 %v410
        %591 = vmatpush2.msra.mxu0 %v409
        %592 = vmatprep.mubr.f32.mxu0 %v455
        %593 = vmatmul.mubr.f32.gmra.mxu0 %v448
        %v594 = vpop.f32.mrf.mxu0
        %v595 = vadd.f32 %v524, %v594
        %v596 = vpop.f32.mrf.mxu0
        %v597 = vadd.f32 %v526, %v596
        %598 = vdwg.mxu0
        %599 = vmatprep.subr.mxu0 0.0
        %600 = vmatpush1.msra.mxu0 %v312
        %601 = vmatprep.subr.mxu0 0.0
        %602 = vmatpush1.msra.mxu0 %v309
        %603 = vmatprep.subr.mxu0 0.0
        %604 = vmatpush1.msra.mxu0 %v306
        %605 = vmatprep.subr.mxu0 0.0
        %606 = vmatpush1.msra.mxu0 %v303
        %607 = vmatprep.subr.mxu0 0.0
        %608 = vmatpush1.msra.mxu0 %v300
        %609 = vmatprep.subr.mxu0 0.0
        %610 = vmatpush1.msra.mxu0 %v297
        %611 = vmatprep.subr.mxu0 0.0
        %612 = vmatpush1.msra.mxu0 %v294
        %613 = vmatprep.subr.mxu0 0.0
        %614 = vmatpush1.msra.mxu0 %v291
        %615 = vmatprep.subr.mxu0 0.0
        %616 = vmatpush1.msra.mxu0 %v288
        %617 = vmatprep.subr.mxu0 0.0
        %618 = vmatpush1.msra.mxu0 %v285
        %619 = vmatprep.subr.mxu0 0.0
        %620 = vmatpush1.msra.mxu0 %v282
        %621 = vmatprep.subr.mxu0 0.0
        %622 = vmatpush1.msra.mxu0 %v279
        %623 = vmatprep.subr.mxu0 0.0
        %624 = vmatpush1.msra.mxu0 %v276
        %625 = vmatprep.subr.mxu0 0.0
        %626 = vmatpush1.msra.mxu0 %v273
        %627 = vmatprep.subr.mxu0 0.0
        %628 = vmatpush1.msra.mxu0 %v270
        %629 = vmatprep.subr.mxu0 0.0
        %630 = vmatpush1.msra.mxu0 %v267
        %631 = vmatprep.subr.mxu0 0.0
        %632 = vmatpush2.msra.mxu0 %v360
        %633 = vmatprep.subr.mxu0 0.0
        %634 = vmatpush2.msra.mxu0 %v357
        %635 = vmatprep.subr.mxu0 0.0
        %636 = vmatpush2.msra.mxu0 %v354
        %637 = vmatprep.subr.mxu0 0.0
        %638 = vmatpush2.msra.mxu0 %v351
        %639 = vmatprep.subr.mxu0 0.0
        %640 = vmatpush2.msra.mxu0 %v348
        %641 = vmatprep.subr.mxu0 0.0
        %642 = vmatpush2.msra.mxu0 %v345
        %643 = vmatprep.subr.mxu0 0.0
        %644 = vmatpush2.msra.mxu0 %v342
        %645 = vmatprep.subr.mxu0 0.0
        %646 = vmatpush2.msra.mxu0 %v339
        %647 = vmatprep.subr.mxu0 0.0
        %648 = vmatpush2.msra.mxu0 %v336
        %649 = vmatprep.subr.mxu0 0.0
        %650 = vmatpush2.msra.mxu0 %v333
        %651 = vmatprep.subr.mxu0 0.0
        %652 = vmatpush2.msra.mxu0 %v330
        %653 = vmatprep.subr.mxu0 0.0
        %654 = vmatpush2.msra.mxu0 %v327
        %655 = vmatprep.subr.mxu0 0.0
        %656 = vmatpush2.msra.mxu0 %v324
        %657 = vmatprep.subr.mxu0 0.0
        %658 = vmatpush2.msra.mxu0 %v321
        %659 = vmatprep.subr.mxu0 0.0
        %660 = vmatpush2.msra.mxu0 %v318
        %661 = vmatprep.subr.mxu0 0.0
        %662 = vmatpush2.msra.mxu0 %v315
        %663 = vmatprep.mubr.f32.mxu0 %v449
        %664 = vmatmul.mubr.f32.gmra.mxu0 %v441
        %v665 = vpop.f32.mrf.mxu0
        %v666 = vadd.f32 %v431, %v665
        %v667 = vpop.f32.mrf.mxu0
        %668 = vdwg.mxu0
        %669 = vmatprep.subr.mxu0 0.0
        %670 = vmatpush1.msra.mxu0 %v408
        %671 = vmatprep.subr.mxu0 0.0
        %672 = vmatpush1.msra.mxu0 %v405
        %673 = vmatprep.subr.mxu0 0.0
        %674 = vmatpush1.msra.mxu0 %v402
        %675 = vmatprep.subr.mxu0 0.0
        %676 = vmatpush1.msra.mxu0 %v399
        %677 = vmatprep.subr.mxu0 0.0
        %678 = vmatpush1.msra.mxu0 %v396
        %679 = vmatprep.subr.mxu0 0.0
        %680 = vmatpush1.msra.mxu0 %v393
        %681 = vmatprep.subr.mxu0 0.0
        %682 = vmatpush1.msra.mxu0 %v390
        %683 = vmatprep.subr.mxu0 0.0
        %684 = vmatpush1.msra.mxu0 %v387
        %685 = vmatprep.subr.mxu0 0.0
        %686 = vmatpush1.msra.mxu0 %v384
        %687 = vmatprep.subr.mxu0 0.0
        %688 = vmatpush1.msra.mxu0 %v381
        %689 = vmatprep.subr.mxu0 0.0
        %690 = vmatpush1.msra.mxu0 %v378
        %691 = vmatprep.subr.mxu0 0.0
        %692 = vmatpush1.msra.mxu0 %v375
        %693 = vmatprep.subr.mxu0 0.0
        %694 = vmatpush1.msra.mxu0 %v372
        %695 = vmatprep.subr.mxu0 0.0
        %696 = vmatpush1.msra.mxu0 %v369
        %697 = vmatprep.subr.mxu0 0.0
        %698 = vmatpush1.msra.mxu0 %v366
        %699 = vmatprep.subr.mxu0 0.0
        %700 = vmatpush1.msra.mxu0 %v363
        %701 = vmatprep.subr.mxu0 0.0
        %702 = vmatpush2.msra.mxu0 0.0
        %703 = vmatprep.subr.mxu0 0.0
        %704 = vmatpush2.msra.mxu0 0.0
        %705 = vmatprep.subr.mxu0 0.0
        %706 = vmatpush2.msra.mxu0 0.0
        %707 = vmatprep.subr.mxu0 0.0
        %708 = vmatpush2.msra.mxu0 0.0
        %709 = vmatprep.subr.mxu0 0.0
        %710 = vmatpush2.msra.mxu0 0.0
        %711 = vmatprep.subr.mxu0 0.0
        %712 = vmatpush2.msra.mxu0 0.0
        %713 = vmatprep.subr.mxu0 0.0
        %714 = vmatpush2.msra.mxu0 0.0
        %715 = vmatprep.subr.mxu0 0.0
        %716 = vmatpush2.msra.mxu0 0.0
        %717 = vmatprep.subr.mxu0 0.0
        %718 = vmatpush2.msra.mxu0 0.0
        %719 = vmatprep.subr.mxu0 0.0
        %720 = vmatpush2.msra.mxu0 0.0
        %721 = vmatprep.subr.mxu0 0.0
        %722 = vmatpush2.msra.mxu0 %v426
        %723 = vmatprep.subr.mxu0 0.0
        %724 = vmatpush2.msra.mxu0 %v423
        %725 = vmatprep.subr.mxu0 0.0
        %726 = vmatpush2.msra.mxu0 %v420
        %727 = vmatprep.subr.mxu0 0.0
        %728 = vmatpush2.msra.mxu0 %v417
        %729 = vmatprep.subr.mxu0 0.0
        %730 = vmatpush2.msra.mxu0 %v414
        %731 = vmatprep.subr.mxu0 0.0
        %732 = vmatpush2.msra.mxu0 %v411
        %733 = vmatprep.mubr.f32.mxu0 %v455
        %734 = vmatmul.mubr.f32.gmra.mxu0 %v448
        %v735 = vpop.f32.mrf.mxu0
        %v736 = vadd.f32 %v666, %v735
        %v737 = vpop.f32.mrf.mxu0
        %738 = vdwg.mxu0
        %v739 = vld [vmem:[%s234] sm:$0x3f]
        %v741 = vcombine.high %v739, %v739
        %v743 = vunpack.c.l.s4 1983009808
        %v744 = vunpack.c.0.s8 %v743
        %v745 = vlaneseq
        %v746 = vshrl.u32 %v745, 7
        %v747 = vsub.s32 %v744, %v746
        %v748 = vrot.slane %v739, %v747
        %v750 = vunpack.c.l.s4 1983009808
        %v751 = vunpack.c.0.s8 %v750
        %v752 = vlaneseq
        %v753 = vshrl.u32 %v752, 7
        %v754 = vsub.s32 %v751, %v753
        %v755 = vrot.slane %v741, %v754
        %v756 = vcombine.high %v748, %v748
        %v760 = vadd.f32 %v595, %v748
        %v761 = vadd.f32 %v597, %v756
        %v762 = vadd.f32 %v736, %v755
        %v766 = vcombine.low %v760, %v761
        %v768 = vunpack.c.l.s4 1983009808
        %v769 = vunpack.c.0.s8 %v768
        %v770 = vlaneseq
        %v771 = vshrl.u32 %v770, 7
        %v772 = vsub.s32 %v769, %v771
        %v773 = vrot.slane %v766, %v772
        %v775 = vunpack.c.l.s4 1983009808
        %v776 = vunpack.c.0.s8 %v775
        %v777 = vlaneseq
        %v778 = vshrl.u32 %v777, 7
        %v779 = vsub.s32 %v776, %v778
        %v780 = vrot.slane %v762, %v779
        %v781 = vcombine.low %v773, %v780
        %vm783 = vcmask 1041408
        %vm784 = vcmask 1043458
        %vm785 = vmor %vm784, %vm783
        %vm786 = vcmask 553988
        %vm787 = vmor %vm786, %vm785
        %788 = vst.msk [vmem:[%s263] sm:$0x3f] %vm787, %v781
        %s789 = sand.u32 %s124, 1
        %s790 = scalar_lea.sflag [#allocation4], %s789
        %s791 = sand.u32 %s124, 1
        %s792 = smul.addr %s791, 6
        %s793 = scalar_lea.vmem [#allocation8], %s792
        // Predicated region
        $region49: #{tpu_custom_call.1} parent=35 // pred_check
          %p794 = pneg %p134
        $region50: #{tpu_custom_call.1} parent=35 // pred_check_branch
          %796 = sbr.rel (%p794) target = $region52
        $region51: #{tpu_custom_call.1} parent=35 // pred_region
          %s798 = ssub.s32 96, 96
          %799 = vsyncadd %s790, %s798
          %s800 = smul.addr %s22, 3
          %s801 = smul.addr %s800, 32
          %s802 = scalar_lea.hbm %s4, %s801
          %s804 = sshll.u32 %s793, 4
          %s805 = int_to_ptr.vmem [resolvable:$true] %s804
          %807 = dma.vmem_to_hbm [thread:$0]  %s805, 96, %s802, %s790
        $region52: #{tpu_custom_call.1} parent=35 // pred_fallthru
          _
      $region36: #{tpu_custom_call.1} parent=5 // pred_fallthru
        _
      %p808 = scmp.le.s32.totalorder 2, %s17
      // Predicated region
      $region53: #{tpu_custom_call.1} parent=5 // pred_check
        %p809 = pneg %p808
      $region54: #{tpu_custom_call.1} parent=5 // pred_check_branch
        %811 = sbr.rel (%p809) target = $region56
      $region55: #{tpu_custom_call.1} parent=5 // pred_region
        %s812 = ssub.s32 %s17, 2
        // Predicated region
        $region57: #{tpu_custom_call.1} parent=55 // pred_check
          %p813 = pneg %p140
        $region58: #{tpu_custom_call.1} parent=55 // pred_check_branch
          %815 = sbr.rel (%p813) target = $region60
        $region59: #{tpu_custom_call.1} parent=55 // pred_region
          %s816 = sand.u32 %s125, 1
          %s817 = scalar_lea.sflag [#allocation4], %s816
          %s818 = sand.u32 %s125, 1
          %s819 = smul.addr %s818, 6
          %s820 = scalar_lea.vmem [#allocation8], %s819
          %821 = dma.done %s817, 96
        $region60: #{tpu_custom_call.1} parent=55 // pred_fallthru
          _
      $region56: #{tpu_custom_call.1} parent=5 // pred_fallthru
        _
    $region6: #{tpu_custom_call.1} parent=1 // loop_footer
      %s21 = sadd.s32 1, %s17
    $region7: #{tpu_custom_call.1} parent=1 // loop_footer_branch
      %16 = sbr.rel target = $region3
    $region8: #{tpu_custom_call.1} parent=1 // loop_exit
      _
    %822 = vsyncpa [#allocation3], 1
    %s823 = scalar_lea.sflag [#allocation3], 1
    %824 = vsyncpa %s823, 1
    %825 = vsyncpa [#allocation6], 1
    %s826 = scalar_lea.sflag [#allocation6], 1
    %827 = vsyncpa %s826, 1
    %828 = vsyncpa [#allocation4], 1
    %s829 = scalar_lea.sflag [#allocation4], 1
    %830 = vsyncpa %s829, 1

</llo_original>
